<compile_context>
chip_gen: v7x
topology: tpu7x:2x2x1
jax: 0.10.0
libtpu: 0.0.40
codegen_flags: <defaults>
</compile_context>

<pallas_src>
import jax
import jax.numpy as jnp
from jax.experimental import pallas as pl
from jax.experimental.pallas import tpu as pltpu


# ----------------------------------------------------------------------------
# Pallas kernel: fused bidirectional LSTM recurrence, Tc time steps per grid
# iteration.  h/c carried in VMEM scratch across grid steps.
# ----------------------------------------------------------------------------
def _bilstm_rec_kernel(xp_ref, u_ref, out_ref, h_sc, c_sc):
    """xp_ref : (Tc, B, 4G)  precomputed gate pre-activations (x-part + all
                             biases), gate-major [i | f | c | o], each block
                             G = 2H wide with [fwd H | bwd H] inside.
       u_ref  : (G, 4G)      block-diagonal recurrent weights, same layout.
       out_ref: (Tc, B, 2G)  per-step [h | c].
       h_sc/c_sc : (B, G)    state carried across grid steps.
    """
    @pl.when(pl.program_id(0) == 0)
    def _():
        h_sc[...] = jnp.zeros_like(h_sc)
        c_sc[...] = jnp.zeros_like(c_sc)

    G = h_sc.shape[-1]
    Tc = xp_ref.shape[0]
    U = u_ref[...]

    def step(s, carry):
        h, c = carry
        # Single recurrent matmul for all 4 gates of both directions.
        g = xp_ref[s] + jnp.dot(h, U, preferred_element_type=jnp.float32)
        i = jax.nn.sigmoid(g[:, 0 * G:1 * G])
        f = jax.nn.sigmoid(g[:, 1 * G:2 * G])   # pre-act reuses xi (ref quirk)
        c = f * c + i * jnp.tanh(g[:, 2 * G:3 * G])
        o = jax.nn.sigmoid(g[:, 3 * G:4 * G])
        h = o * jnp.tanh(c)
        out_ref[s] = jnp.concatenate([h, c], axis=-1).astype(out_ref.dtype)
        return h, c

    h, c = jax.lax.fori_loop(0, Tc, step, (h_sc[...], c_sc[...]), unroll=True)
    h_sc[...] = h
    c_sc[...] = c


def _bilstm_pallas(xp_all, u_big, B, G, Tc):
    """xp_all: (Tpad, B, 4G), u_big: (G, 4G) -> (Tpad, B, 2G) [h | c]."""
    Tpad = xp_all.shape[0]

    grid_spec = pltpu.PrefetchScalarGridSpec(
        num_scalar_prefetch=0,
        grid=(Tpad // Tc,),
        in_specs=[
            pl.BlockSpec((Tc, B, 4 * G), lambda n: (n, 0, 0)),
            pl.BlockSpec((G, 4 * G), lambda n: (0, 0)),     # grid-invariant
        ],
        out_specs=pl.BlockSpec((Tc, B, 2 * G), lambda n: (n, 0, 0)),
        scratch_shapes=[
            pltpu.VMEM((B, G), jnp.float32),
            pltpu.VMEM((B, G), jnp.float32),
        ],
    )

    return pl.pallas_call(
        _bilstm_rec_kernel,
        out_shape=jax.ShapeDtypeStruct((Tpad, B, 2 * G), jnp.float32),
        grid_spec=grid_spec,
        compiler_params=pltpu.CompilerParams(
            dimension_semantics=("arbitrary",)),   # time recurrence is serial
    )(xp_all, u_big)


# ----------------------------------------------------------------------------
# Wrapper-side precomputation (hoisted out of the serial loop).
# ----------------------------------------------------------------------------
def _precompute_gate_preacts(X, p):
    """X: (B, T, D) -> (T, B, 4H) pre-activations [i, f, c, o] for ONE
    direction, with the W-projections and all additive biases folded in."""
    H = p["Ui"].shape[0]
    Wcat = jnp.concatenate([p["Wi"], p["Wc"], p["Wo"]], axis=1)   # (D, 3H)
    P = jnp.einsum("btd,dk->tbk", X, Wcat)                        # (T, B, 3H)
    pi = P[..., 0 * H:1 * H]
    pc = P[..., 1 * H:2 * H]
    po = P[..., 2 * H:3 * H]
    # W_i / W_c / W_o biases are the constant 0 in the reference module; the
    # forget gate reuses the W_i projection (xi), so W_f / xf are dead.
    return jnp.concatenate(
        [pi,                    # i gate : xi            (U_i has no bias)
         pi + p["bUf"],         # f gate : xi + b_Uf     (reference quirk)
         pc + p["bUc"],         # c gate : xc + b_Uc
         po + p["bUo"]],        # o gate : xo + b_Uo
        axis=-1)                                                  # (T, B, 4H)


def _fuse_directions(xp_f, xp_b, H):
    """(T, B, 4H) x2 -> (T, B, 8H) gate-major, [fwd H | bwd H] per gate."""
    T, B, _ = xp_f.shape
    a = xp_f.reshape(T, B, 4, H)
    b = xp_b.reshape(T, B, 4, H)
    return jnp.concatenate([a, b], axis=-1).reshape(T, B, 8 * H)


def _fuse_recurrent_weights(pf, pb):
    """Block-diagonal per-gate stacking: (2H, 8H)."""
    H = pf["Ui"].shape[0]
    z = jnp.zeros((H, H), jnp.float32)

    def gate(uf, ub):
        return jnp.block([[uf, z], [z, ub]])        # (2H, 2H)

    return jnp.concatenate(
        [gate(pf["Ui"], pb["Ui"]), gate(pf["Uf"], pb["Uf"]),
         gate(pf["Uc"], pb["Uc"]), gate(pf["Uo"], pb["Uo"])], axis=1)


# ----------------------------------------------------------------------------
# BiLSTM forward (eval mode, p_dropout = 0).
# ----------------------------------------------------------------------------
@jax.jit
def bilstm_forward(X, params):
    """X: (B, T, in_dim) -> (h_hist, c_hist), each (B, T, out_dim)."""
    pf, pb = params["fwd"], params["bwd"]
    B, T, _ = X.shape
    H = pf["Ui"].shape[0]
    G = 2 * H

    # 1) Hoisted input projections (one large MXU matmul per direction); the
    #    backward direction's time reversal is folded in here.
    xp_f = _precompute_gate_preacts(X, pf)                       # (T, B, 4H)
    xp_b = _precompute_gate_preacts(jnp.flip(X, axis=1), pb)     # (T, B, 4H)
    xp_all = _fuse_directions(xp_f, xp_b, H)                     # (T, B, 4G)

    # 2) Chunk the time axis to amortize per-grid-step overhead.
    Tc = min(T, 16)
    Tpad = ((T + Tc - 1) // Tc) * Tc
    if Tpad != T:
        xp_all = jnp.pad(xp_all, ((0, Tpad - T), (0, 0), (0, 0)))

    u_big = _fuse_recurrent_weights(pf, pb)                      # (G, 4G)

    # 3) Fused bidirectional recurrence in Pallas.
    out = _bilstm_pallas(xp_all, u_big, B, G, Tc)                # (Tpad,B,2G)

    # 4) Unpack: split [h | c], un-reverse the backward half of the history.
    out = jnp.transpose(out[:T], (1, 0, 2))                      # (B, T, 2G)
    h_all, c_all = out[..., :G], out[..., G:]
    h_hist = jnp.concatenate(
        [h_all[..., :H], jnp.flip(h_all[..., H:], axis=1)], axis=-1)
    c_hist = jnp.concatenate(
        [c_all[..., :H], jnp.flip(c_all[..., H:], axis=1)], axis=-1)
    return h_hist, c_hist


# ----------------------------------------------------------------------------
# Parameter construction (deterministic, synthetic).
# ----------------------------------------------------------------------------
def _make_lstm_params(key, in_dim, out_dim):
    """One LSTM(in_dim, out_dim) direction.  Mirrors the PyTorch module:
    W_i/W_c/W_o input projections (their biases are the constants 0), U_i
    without bias, U_f/U_c/U_o with bias.  W_f and its bias (=1.0) are omitted
    because forward_node never uses xf (the forget gate reuses xi)."""
    ks = jax.random.split(key, 10)
    s_in = 1.0 / jnp.sqrt(jnp.float32(in_dim))
    s_h = 1.0 / jnp.sqrt(jnp.float32(out_dim))
    u = lambda k, shape, s: jax.random.uniform(k, shape, jnp.float32, -s, s)
    return dict(
        Wi=u(ks[0], (in_dim, out_dim), s_in),
        Wc=u(ks[1], (in_dim, out_dim), s_in),
        Wo=u(ks[2], (in_dim, out_dim), s_in),
        Ui=u(ks[3], (out_dim, out_dim), s_h),
        Uf=u(ks[4], (out_dim, out_dim), s_h),
        Uc=u(ks[5], (out_dim, out_dim), s_h),
        Uo=u(ks[6], (out_dim, out_dim), s_h),
        bUf=u(ks[7], (out_dim,), s_h),
        bUc=u(ks[8], (out_dim,), s_h),
        bUo=u(ks[9], (out_dim,), s_h),
    )


def make_bilstm_params(key, in_dim, out_dim):
    half = out_dim // 2
    kf, kb = jax.random.split(key)
    return dict(fwd=_make_lstm_params(kf, in_dim, half),
                bwd=_make_lstm_params(kb, in_dim, half))


# ----------------------------------------------------------------------------
# Pure-JAX reference (direct transcription of the PyTorch code) for checking.
# ----------------------------------------------------------------------------
def _lstm_ref(X, p):
    B, T, _ = X.shape
    H = p["Ui"].shape[0]
    Xi = jnp.einsum("btd,dh->bth", X, p["Wi"])
    Xc = jnp.einsum("btd,dh->bth", X, p["Wc"])
    Xo = jnp.einsum("btd,dh->bth", X, p["Wo"])
    h = jnp.zeros((B, H), jnp.float32)
    c = jnp.zeros((B, H), jnp.float32)
    hs, cs = [], []
    for t in range(T):
        xi, xc, xo = Xi[:, t], Xc[:, t], Xo[:, t]
        i = jax.nn.sigmoid(xi + h @ p["Ui"])
        f = jax.nn.sigmoid(xi + h @ p["Uf"] + p["bUf"])   # xi: reference quirk
        c = f * c + i * jnp.tanh(xc + h @ p["Uc"] + p["bUc"])
        o = jax.nn.sigmoid(xo + h @ p["Uo"] + p["bUo"])
        h = o * jnp.tanh(c)
        hs.append(h)
        cs.append(c)
    return jnp.stack(hs, axis=1), jnp.stack(cs, axis=1)


def _bilstm_ref(X, params):
    h_f, c_f = _lstm_ref(X, params["fwd"])
    h_b, c_b = _lstm_ref(jnp.flip(X, axis=1), params["bwd"])
    return (jnp.concatenate([h_f, jnp.flip(h_b, axis=1)], axis=-1),
            jnp.concatenate([c_f, jnp.flip(c_b, axis=1)], axis=-1))


if __name__ == "__main__":
    B, T, IN_DIM, OUT_DIM = 2, 8, 16, 32

    key = jax.random.PRNGKey(0)
    kx, kp = jax.random.split(key)
    X = jax.random.normal(kx, (B, T, IN_DIM), dtype=jnp.float32)
    params = make_bilstm_params(kp, IN_DIM, OUT_DIM)

    h_hist, c_hist = bilstm_forward(X, params)
    jax.block_until_ready((h_hist, c_hist))

    assert h_hist.shape == (B, T, OUT_DIM), h_hist.shape
    assert c_hist.shape == (B, T, OUT_DIM), c_hist.shape

    h_ref, c_ref = _bilstm_ref(X, params)
    assert jnp.allclose(h_hist, h_ref, atol=3e-5, rtol=3e-5), (
        float(jnp.max(jnp.abs(h_hist - h_ref))))
    assert jnp.allclose(c_hist, c_ref, atol=3e-5, rtol=3e-5), (
        float(jnp.max(jnp.abs(c_hist - c_ref))))

    print("KERNEL_OK")
</pallas_src>

<mosaic_0001>
module attributes {stable_mosaic.version = 11 : i64} {
  func.func @_bilstm_rec_kernel(%arg0: i32, %arg1: memref<8x2x128xf32, #tpu.memory_space<vmem>>, %arg2: memref<32x128xf32, #tpu.memory_space<vmem>>, %arg3: memref<8x2x64xf32, #tpu.memory_space<vmem>>, %arg4: memref<2x32xf32, #tpu.memory_space<vmem>>, %arg5: memref<2x32xf32, #tpu.memory_space<vmem>>) attributes {dimension_semantics = [#tpu.dimension_semantics<arbitrary>], iteration_bounds = array<i64: 1>, scalar_prefetch = 0 : i64, scratch_operands = 2 : i64, tpu.core_type = #tpu.core_type<tc>, window_params = [{transform_indices = @transform_0, window_bounds = array<i64: 8, 2, 128>}, {pipeline_mode = #tpu.pipeline_mode<synchronous>, transform_indices = @transform_1, window_bounds = array<i64: 32, 128>}, {transform_indices = @transform_2, window_bounds = array<i64: 8, 2, 64>}]} {
    %c0_i32 = arith.constant 0 : i32
    %0 = arith.cmpi eq, %arg0, %c0_i32 : i32
    %1 = arith.extui %0 : i1 to i32
    %c0_i32_0 = arith.constant 0 : i32
    %2 = arith.cmpi ne, %1, %c0_i32_0 : i32
    scf.if %2 {
      %cst_74 = arith.constant 0.000000e+00 : f32
      %288 = vector.broadcast %cst_74 : f32 to vector<2x32xf32>
      %c0_75 = arith.constant 0 : index
      %c0_76 = arith.constant 0 : index
      %289 = vector.load %arg4[%c0_75, %c0_76] : memref<2x32xf32, #tpu.memory_space<vmem>>, vector<2x32xf32>
      tpu.vector_store %arg4[%c0_75, %c0_76], %288 {strides = array<i32>} : memref<2x32xf32, #tpu.memory_space<vmem>>, vector<2x32xf32>,
      %cst_77 = arith.constant 0.000000e+00 : f32
      %290 = vector.broadcast %cst_77 : f32 to vector<2x32xf32>
      %c0_78 = arith.constant 0 : index
      %c0_79 = arith.constant 0 : index
      %291 = vector.load %arg5[%c0_78, %c0_79] : memref<2x32xf32, #tpu.memory_space<vmem>>, vector<2x32xf32>
      tpu.vector_store %arg5[%c0_78, %c0_79], %290 {strides = array<i32>} : memref<2x32xf32, #tpu.memory_space<vmem>>, vector<2x32xf32>,
    } else {
    }
    %c0 = arith.constant 0 : index
    %c0_1 = arith.constant 0 : index
    %3 = vector.load %arg2[%c0, %c0_1] : memref<32x128xf32, #tpu.memory_space<vmem>>, vector<32x128xf32>
    %c0_2 = arith.constant 0 : index
    %c0_3 = arith.constant 0 : index
    %4 = vector.load %arg4[%c0_2, %c0_3] : memref<2x32xf32, #tpu.memory_space<vmem>>, vector<2x32xf32>
    %c0_4 = arith.constant 0 : index
    %c0_5 = arith.constant 0 : index
    %5 = vector.load %arg5[%c0_4, %c0_5] : memref<2x32xf32, #tpu.memory_space<vmem>>, vector<2x32xf32>
    %c0_i32_6 = arith.constant 0 : i32
    %6 = arith.index_cast %c0_i32_6 : i32 to index
    %c0_7 = arith.constant 0 : index
    %c0_8 = arith.constant 0 : index
    %7 = vector.load %arg1[%6, %c0_7, %c0_8] : memref<8x2x128xf32, #tpu.memory_space<vmem>>, vector<1x2x128xf32>
    %8 = vector.shape_cast %7 : vector<1x2x128xf32> to vector<2x128xf32>
    %cst = arith.constant dense<0.000000e+00> : vector<2x128xf32>
    %9 = tpu.matmul %4, %3, %cst {dimension_numbers = #tpu.dot_dimension_numbers<[1], [0], [0], [1], [0, 0, 1, 1], [], []>} : vector<2x32xf32>, vector<32x128xf32>, vector<2x128xf32> -> vector<2x128xf32>
    %10 = arith.addf %8, %9 : vector<2x128xf32>
    %11 = vector.extract_strided_slice %10 {offsets = [0, 0], sizes = [2, 32], strides = [1, 1]} : vector<2x128xf32> to vector<2x32xf32>
    %12 = arith.negf %11 : vector<2x32xf32>
    %13 = math.exp %12 : vector<2x32xf32>
    %cst_9 = arith.constant 1.000000e+00 : f32
    %14 = vector.broadcast %cst_9 : f32 to vector<2x32xf32>
    %15 = arith.addf %14, %13 : vector<2x32xf32>
    %16 = arith.divf %14, %15 : vector<2x32xf32>
    %17 = vector.extract_strided_slice %10 {offsets = [0, 32], sizes = [2, 32], strides = [1, 1]} : vector<2x128xf32> to vector<2x32xf32>
    %18 = arith.negf %17 : vector<2x32xf32>
    %19 = math.exp %18 : vector<2x32xf32>
    %cst_10 = arith.constant 1.000000e+00 : f32
    %20 = vector.broadcast %cst_10 : f32 to vector<2x32xf32>
    %21 = arith.addf %20, %19 : vector<2x32xf32>
    %22 = arith.divf %20, %21 : vector<2x32xf32>
    %23 = arith.mulf %22, %5 : vector<2x32xf32>
    %24 = vector.extract_strided_slice %10 {offsets = [0, 64], sizes = [2, 32], strides = [1, 1]} : vector<2x128xf32> to vector<2x32xf32>
    %25 = math.tanh %24 : vector<2x32xf32>
    %26 = arith.mulf %16, %25 : vector<2x32xf32>
    %27 = arith.addf %23, %26 : vector<2x32xf32>
    %28 = vector.extract_strided_slice %10 {offsets = [0, 96], sizes = [2, 32], strides = [1, 1]} : vector<2x128xf32> to vector<2x32xf32>
    %29 = arith.negf %28 : vector<2x32xf32>
    %30 = math.exp %29 : vector<2x32xf32>
    %cst_11 = arith.constant 1.000000e+00 : f32
    %31 = vector.broadcast %cst_11 : f32 to vector<2x32xf32>
    %32 = arith.addf %31, %30 : vector<2x32xf32>
    %33 = arith.divf %31, %32 : vector<2x32xf32>
    %34 = math.tanh %27 : vector<2x32xf32>
    %35 = arith.mulf %33, %34 : vector<2x32xf32>
    %36 = tpu.concatenate %35, %27 in 1 : vector<2x32xf32>, vector<2x32xf32> -> vector<2x64xf32>
    %37 = arith.index_cast %c0_i32_6 : i32 to index
    %c0_12 = arith.constant 0 : index
    %c0_13 = arith.constant 0 : index
    %38 = vector.load %arg3[%37, %c0_12, %c0_13] : memref<8x2x64xf32, #tpu.memory_space<vmem>>, vector<1x2x64xf32>
    %39 = vector.shape_cast %38 : vector<1x2x64xf32> to vector<2x64xf32>
    %40 = vector.shape_cast %36 : vector<2x64xf32> to vector<1x2x64xf32>
    tpu.vector_store %arg3[%37, %c0_12, %c0_13], %40 {strides = array<i32>} : memref<8x2x64xf32, #tpu.memory_space<vmem>>, vector<1x2x64xf32>,
    %c1_i32 = arith.constant 1 : i32
    %41 = arith.index_cast %c1_i32 : i32 to index
    %c0_14 = arith.constant 0 : index
    %c0_15 = arith.constant 0 : index
    %42 = vector.load %arg1[%41, %c0_14, %c0_15] : memref<8x2x128xf32, #tpu.memory_space<vmem>>, vector<1x2x128xf32>
    %43 = vector.shape_cast %42 : vector<1x2x128xf32> to vector<2x128xf32>
    %cst_16 = arith.constant dense<0.000000e+00> : vector<2x128xf32>
    %44 = tpu.matmul %35, %3, %cst_16 {dimension_numbers = #tpu.dot_dimension_numbers<[1], [0], [0], [1], [0, 0, 1, 1], [], []>} : vector<2x32xf32>, vector<32x128xf32>, vector<2x128xf32> -> vector<2x128xf32>
    %45 = arith.addf %43, %44 : vector<2x128xf32>
    %46 = vector.extract_strided_slice %45 {offsets = [0, 0], sizes = [2, 32], strides = [1, 1]} : vector<2x128xf32> to vector<2x32xf32>
    %47 = arith.negf %46 : vector<2x32xf32>
    %48 = math.exp %47 : vector<2x32xf32>
    %cst_17 = arith.constant 1.000000e+00 : f32
    %49 = vector.broadcast %cst_17 : f32 to vector<2x32xf32>
    %50 = arith.addf %49, %48 : vector<2x32xf32>
    %51 = arith.divf %49, %50 : vector<2x32xf32>
    %52 = vector.extract_strided_slice %45 {offsets = [0, 32], sizes = [2, 32], strides = [1, 1]} : vector<2x128xf32> to vector<2x32xf32>
    %53 = arith.negf %52 : vector<2x32xf32>
    %54 = math.exp %53 : vector<2x32xf32>
    %cst_18 = arith.constant 1.000000e+00 : f32
    %55 = vector.broadcast %cst_18 : f32 to vector<2x32xf32>
    %56 = arith.addf %55, %54 : vector<2x32xf32>
    %57 = arith.divf %55, %56 : vector<2x32xf32>
    %58 = arith.mulf %57, %27 : vector<2x32xf32>
    %59 = vector.extract_strided_slice %45 {offsets = [0, 64], sizes = [2, 32], strides = [1, 1]} : vector<2x128xf32> to vector<2x32xf32>
    %60 = math.tanh %59 : vector<2x32xf32>
    %61 = arith.mulf %51, %60 : vector<2x32xf32>
    %62 = arith.addf %58, %61 : vector<2x32xf32>
    %63 = vector.extract_strided_slice %45 {offsets = [0, 96], sizes = [2, 32], strides = [1, 1]} : vector<2x128xf32> to vector<2x32xf32>
    %64 = arith.negf %63 : vector<2x32xf32>
    %65 = math.exp %64 : vector<2x32xf32>
    %cst_19 = arith.constant 1.000000e+00 : f32
    %66 = vector.broadcast %cst_19 : f32 to vector<2x32xf32>
    %67 = arith.addf %66, %65 : vector<2x32xf32>
    %68 = arith.divf %66, %67 : vector<2x32xf32>
    %69 = math.tanh %62 : vector<2x32xf32>
    %70 = arith.mulf %68, %69 : vector<2x32xf32>
    %71 = tpu.concatenate %70, %62 in 1 : vector<2x32xf32>, vector<2x32xf32> -> vector<2x64xf32>
    %72 = arith.index_cast %c1_i32 : i32 to index
    %c0_20 = arith.constant 0 : index
    %c0_21 = arith.constant 0 : index
    %73 = vector.load %arg3[%72, %c0_20, %c0_21] : memref<8x2x64xf32, #tpu.memory_space<vmem>>, vector<1x2x64xf32>
    %74 = vector.shape_cast %73 : vector<1x2x64xf32> to vector<2x64xf32>
    %75 = vector.shape_cast %71 : vector<2x64xf32> to vector<1x2x64xf32>
    tpu.vector_store %arg3[%72, %c0_20, %c0_21], %75 {strides = array<i32>} : memref<8x2x64xf32, #tpu.memory_space<vmem>>, vector<1x2x64xf32>,
    %c2_i32 = arith.constant 2 : i32
    %76 = arith.index_cast %c2_i32 : i32 to index
    %c0_22 = arith.constant 0 : index
    %c0_23 = arith.constant 0 : index
    %77 = vector.load %arg1[%76, %c0_22, %c0_23] : memref<8x2x128xf32, #tpu.memory_space<vmem>>, vector<1x2x128xf32>
    %78 = vector.shape_cast %77 : vector<1x2x128xf32> to vector<2x128xf32>
    %cst_24 = arith.constant dense<0.000000e+00> : vector<2x128xf32>
    %79 = tpu.matmul %70, %3, %cst_24 {dimension_numbers = #tpu.dot_dimension_numbers<[1], [0], [0], [1], [0, 0, 1, 1], [], []>} : vector<2x32xf32>, vector<32x128xf32>, vector<2x128xf32> -> vector<2x128xf32>
    %80 = arith.addf %78, %79 : vector<2x128xf32>
    %81 = vector.extract_strided_slice %80 {offsets = [0, 0], sizes = [2, 32], strides = [1, 1]} : vector<2x128xf32> to vector<2x32xf32>
    %82 = arith.negf %81 : vector<2x32xf32>
    %83 = math.exp %82 : vector<2x32xf32>
    %cst_25 = arith.constant 1.000000e+00 : f32
    %84 = vector.broadcast %cst_25 : f32 to vector<2x32xf32>
    %85 = arith.addf %84, %83 : vector<2x32xf32>
    %86 = arith.divf %84, %85 : vector<2x32xf32>
    %87 = vector.extract_strided_slice %80 {offsets = [0, 32], sizes = [2, 32], strides = [1, 1]} : vector<2x128xf32> to vector<2x32xf32>
    %88 = arith.negf %87 : vector<2x32xf32>
    %89 = math.exp %88 : vector<2x32xf32>
    %cst_26 = arith.constant 1.000000e+00 : f32
    %90 = vector.broadcast %cst_26 : f32 to vector<2x32xf32>
    %91 = arith.addf %90, %89 : vector<2x32xf32>
    %92 = arith.divf %90, %91 : vector<2x32xf32>
    %93 = arith.mulf %92, %62 : vector<2x32xf32>
    %94 = vector.extract_strided_slice %80 {offsets = [0, 64], sizes = [2, 32], strides = [1, 1]} : vector<2x128xf32> to vector<2x32xf32>
    %95 = math.tanh %94 : vector<2x32xf32>
    %96 = arith.mulf %86, %95 : vector<2x32xf32>
    %97 = arith.addf %93, %96 : vector<2x32xf32>
    %98 = vector.extract_strided_slice %80 {offsets = [0, 96], sizes = [2, 32], strides = [1, 1]} : vector<2x128xf32> to vector<2x32xf32>
    %99 = arith.negf %98 : vector<2x32xf32>
    %100 = math.exp %99 : vector<2x32xf32>
    %cst_27 = arith.constant 1.000000e+00 : f32
    %101 = vector.broadcast %cst_27 : f32 to vector<2x32xf32>
    %102 = arith.addf %101, %100 : vector<2x32xf32>
    %103 = arith.divf %101, %102 : vector<2x32xf32>
    %104 = math.tanh %97 : vector<2x32xf32>
    %105 = arith.mulf %103, %104 : vector<2x32xf32>
    %106 = tpu.concatenate %105, %97 in 1 : vector<2x32xf32>, vector<2x32xf32> -> vector<2x64xf32>
    %107 = arith.index_cast %c2_i32 : i32 to index
    %c0_28 = arith.constant 0 : index
    %c0_29 = arith.constant 0 : index
    %108 = vector.load %arg3[%107, %c0_28, %c0_29] : memref<8x2x64xf32, #tpu.memory_space<vmem>>, vector<1x2x64xf32>
    %109 = vector.shape_cast %108 : vector<1x2x64xf32> to vector<2x64xf32>
    %110 = vector.shape_cast %106 : vector<2x64xf32> to vector<1x2x64xf32>
    tpu.vector_store %arg3[%107, %c0_28, %c0_29], %110 {strides = array<i32>} : memref<8x2x64xf32, #tpu.memory_space<vmem>>, vector<1x2x64xf32>,
    %c3_i32 = arith.constant 3 : i32
    %111 = arith.index_cast %c3_i32 : i32 to index
    %c0_30 = arith.constant 0 : index
    %c0_31 = arith.constant 0 : index
    %112 = vector.load %arg1[%111, %c0_30, %c0_31] : memref<8x2x128xf32, #tpu.memory_space<vmem>>, vector<1x2x128xf32>
    %113 = vector.shape_cast %112 : vector<1x2x128xf32> to vector<2x128xf32>
    %cst_32 = arith.constant dense<0.000000e+00> : vector<2x128xf32>
    %114 = tpu.matmul %105, %3, %cst_32 {dimension_numbers = #tpu.dot_dimension_numbers<[1], [0], [0], [1], [0, 0, 1, 1], [], []>} : vector<2x32xf32>, vector<32x128xf32>, vector<2x128xf32> -> vector<2x128xf32>
    %115 = arith.addf %113, %114 : vector<2x128xf32>
    %116 = vector.extract_strided_slice %115 {offsets = [0, 0], sizes = [2, 32], strides = [1, 1]} : vector<2x128xf32> to vector<2x32xf32>
    %117 = arith.negf %116 : vector<2x32xf32>
    %118 = math.exp %117 : vector<2x32xf32>
    %cst_33 = arith.constant 1.000000e+00 : f32
    %119 = vector.broadcast %cst_33 : f32 to vector<2x32xf32>
    %120 = arith.addf %119, %118 : vector<2x32xf32>
    %121 = arith.divf %119, %120 : vector<2x32xf32>
    %122 = vector.extract_strided_slice %115 {offsets = [0, 32], sizes = [2, 32], strides = [1, 1]} : vector<2x128xf32> to vector<2x32xf32>
    %123 = arith.negf %122 : vector<2x32xf32>
    %124 = math.exp %123 : vector<2x32xf32>
    %cst_34 = arith.constant 1.000000e+00 : f32
    %125 = vector.broadcast %cst_34 : f32 to vector<2x32xf32>
    %126 = arith.addf %125, %124 : vector<2x32xf32>
    %127 = arith.divf %125, %126 : vector<2x32xf32>
    %128 = arith.mulf %127, %97 : vector<2x32xf32>
    %129 = vector.extract_strided_slice %115 {offsets = [0, 64], sizes = [2, 32], strides = [1, 1]} : vector<2x128xf32> to vector<2x32xf32>
    %130 = math.tanh %129 : vector<2x32xf32>
    %131 = arith.mulf %121, %130 : vector<2x32xf32>
    %132 = arith.addf %128, %131 : vector<2x32xf32>
    %133 = vector.extract_strided_slice %115 {offsets = [0, 96], sizes = [2, 32], strides = [1, 1]} : vector<2x128xf32> to vector<2x32xf32>
    %134 = arith.negf %133 : vector<2x32xf32>
    %135 = math.exp %134 : vector<2x32xf32>
    %cst_35 = arith.constant 1.000000e+00 : f32
    %136 = vector.broadcast %cst_35 : f32 to vector<2x32xf32>
    %137 = arith.addf %136, %135 : vector<2x32xf32>
    %138 = arith.divf %136, %137 : vector<2x32xf32>
    %139 = math.tanh %132 : vector<2x32xf32>
    %140 = arith.mulf %138, %139 : vector<2x32xf32>
    %141 = tpu.concatenate %140, %132 in 1 : vector<2x32xf32>, vector<2x32xf32> -> vector<2x64xf32>
    %142 = arith.index_cast %c3_i32 : i32 to index
    %c0_36 = arith.constant 0 : index
    %c0_37 = arith.constant 0 : index
    %143 = vector.load %arg3[%142, %c0_36, %c0_37] : memref<8x2x64xf32, #tpu.memory_space<vmem>>, vector<1x2x64xf32>
    %144 = vector.shape_cast %143 : vector<1x2x64xf32> to vector<2x64xf32>
    %145 = vector.shape_cast %141 : vector<2x64xf32> to vector<1x2x64xf32>
    tpu.vector_store %arg3[%142, %c0_36, %c0_37], %145 {strides = array<i32>} : memref<8x2x64xf32, #tpu.memory_space<vmem>>, vector<1x2x64xf32>,
    %c4_i32 = arith.constant 4 : i32
    %146 = arith.index_cast %c4_i32 : i32 to index
    %c0_38 = arith.constant 0 : index
    %c0_39 = arith.constant 0 : index
    %147 = vector.load %arg1[%146, %c0_38, %c0_39] : memref<8x2x128xf32, #tpu.memory_space<vmem>>, vector<1x2x128xf32>
    %148 = vector.shape_cast %147 : vector<1x2x128xf32> to vector<2x128xf32>
    %cst_40 = arith.constant dense<0.000000e+00> : vector<2x128xf32>
    %149 = tpu.matmul %140, %3, %cst_40 {dimension_numbers = #tpu.dot_dimension_numbers<[1], [0], [0], [1], [0, 0, 1, 1], [], []>} : vector<2x32xf32>, vector<32x128xf32>, vector<2x128xf32> -> vector<2x128xf32>
    %150 = arith.addf %148, %149 : vector<2x128xf32>
    %151 = vector.extract_strided_slice %150 {offsets = [0, 0], sizes = [2, 32], strides = [1, 1]} : vector<2x128xf32> to vector<2x32xf32>
    %152 = arith.negf %151 : vector<2x32xf32>
    %153 = math.exp %152 : vector<2x32xf32>
    %cst_41 = arith.constant 1.000000e+00 : f32
    %154 = vector.broadcast %cst_41 : f32 to vector<2x32xf32>
    %155 = arith.addf %154, %153 : vector<2x32xf32>
    %156 = arith.divf %154, %155 : vector<2x32xf32>
    %157 = vector.extract_strided_slice %150 {offsets = [0, 32], sizes = [2, 32], strides = [1, 1]} : vector<2x128xf32> to vector<2x32xf32>
    %158 = arith.negf %157 : vector<2x32xf32>
    %159 = math.exp %158 : vector<2x32xf32>
    %cst_42 = arith.constant 1.000000e+00 : f32
    %160 = vector.broadcast %cst_42 : f32 to vector<2x32xf32>
    %161 = arith.addf %160, %159 : vector<2x32xf32>
    %162 = arith.divf %160, %161 : vector<2x32xf32>
    %163 = arith.mulf %162, %132 : vector<2x32xf32>
    %164 = vector.extract_strided_slice %150 {offsets = [0, 64], sizes = [2, 32], strides = [1, 1]} : vector<2x128xf32> to vector<2x32xf32>
    %165 = math.tanh %164 : vector<2x32xf32>
    %166 = arith.mulf %156, %165 : vector<2x32xf32>
    %167 = arith.addf %163, %166 : vector<2x32xf32>
    %168 = vector.extract_strided_slice %150 {offsets = [0, 96], sizes = [2, 32], strides = [1, 1]} : vector<2x128xf32> to vector<2x32xf32>
    %169 = arith.negf %168 : vector<2x32xf32>
    %170 = math.exp %169 : vector<2x32xf32>
    %cst_43 = arith.constant 1.000000e+00 : f32
    %171 = vector.broadcast %cst_43 : f32 to vector<2x32xf32>
    %172 = arith.addf %171, %170 : vector<2x32xf32>
    %173 = arith.divf %171, %172 : vector<2x32xf32>
    %174 = math.tanh %167 : vector<2x32xf32>
    %175 = arith.mulf %173, %174 : vector<2x32xf32>
    %176 = tpu.concatenate %175, %167 in 1 : vector<2x32xf32>, vector<2x32xf32> -> vector<2x64xf32>
    %177 = arith.index_cast %c4_i32 : i32 to index
    %c0_44 = arith.constant 0 : index
    %c0_45 = arith.constant 0 : index
    %178 = vector.load %arg3[%177, %c0_44, %c0_45] : memref<8x2x64xf32, #tpu.memory_space<vmem>>, vector<1x2x64xf32>
    %179 = vector.shape_cast %178 : vector<1x2x64xf32> to vector<2x64xf32>
    %180 = vector.shape_cast %176 : vector<2x64xf32> to vector<1x2x64xf32>
    tpu.vector_store %arg3[%177, %c0_44, %c0_45], %180 {strides = array<i32>} : memref<8x2x64xf32, #tpu.memory_space<vmem>>, vector<1x2x64xf32>,
    %c5_i32 = arith.constant 5 : i32
    %181 = arith.index_cast %c5_i32 : i32 to index
    %c0_46 = arith.constant 0 : index
    %c0_47 = arith.constant 0 : index
    %182 = vector.load %arg1[%181, %c0_46, %c0_47] : memref<8x2x128xf32, #tpu.memory_space<vmem>>, vector<1x2x128xf32>
    %183 = vector.shape_cast %182 : vector<1x2x128xf32> to vector<2x128xf32>
    %cst_48 = arith.constant dense<0.000000e+00> : vector<2x128xf32>
    %184 = tpu.matmul %175, %3, %cst_48 {dimension_numbers = #tpu.dot_dimension_numbers<[1], [0], [0], [1], [0, 0, 1, 1], [], []>} : vector<2x32xf32>, vector<32x128xf32>, vector<2x128xf32> -> vector<2x128xf32>
    %185 = arith.addf %183, %184 : vector<2x128xf32>
    %186 = vector.extract_strided_slice %185 {offsets = [0, 0], sizes = [2, 32], strides = [1, 1]} : vector<2x128xf32> to vector<2x32xf32>
    %187 = arith.negf %186 : vector<2x32xf32>
    %188 = math.exp %187 : vector<2x32xf32>
    %cst_49 = arith.constant 1.000000e+00 : f32
    %189 = vector.broadcast %cst_49 : f32 to vector<2x32xf32>
    %190 = arith.addf %189, %188 : vector<2x32xf32>
    %191 = arith.divf %189, %190 : vector<2x32xf32>
    %192 = vector.extract_strided_slice %185 {offsets = [0, 32], sizes = [2, 32], strides = [1, 1]} : vector<2x128xf32> to vector<2x32xf32>
    %193 = arith.negf %192 : vector<2x32xf32>
    %194 = math.exp %193 : vector<2x32xf32>
    %cst_50 = arith.constant 1.000000e+00 : f32
    %195 = vector.broadcast %cst_50 : f32 to vector<2x32xf32>
    %196 = arith.addf %195, %194 : vector<2x32xf32>
    %197 = arith.divf %195, %196 : vector<2x32xf32>
    %198 = arith.mulf %197, %167 : vector<2x32xf32>
    %199 = vector.extract_strided_slice %185 {offsets = [0, 64], sizes = [2, 32], strides = [1, 1]} : vector<2x128xf32> to vector<2x32xf32>
    %200 = math.tanh %199 : vector<2x32xf32>
    %201 = arith.mulf %191, %200 : vector<2x32xf32>
    %202 = arith.addf %198, %201 : vector<2x32xf32>
    %203 = vector.extract_strided_slice %185 {offsets = [0, 96], sizes = [2, 32], strides = [1, 1]} : vector<2x128xf32> to vector<2x32xf32>
    %204 = arith.negf %203 : vector<2x32xf32>
    %205 = math.exp %204 : vector<2x32xf32>
    %cst_51 = arith.constant 1.000000e+00 : f32
    %206 = vector.broadcast %cst_51 : f32 to vector<2x32xf32>
    %207 = arith.addf %206, %205 : vector<2x32xf32>
    %208 = arith.divf %206, %207 : vector<2x32xf32>
    %209 = math.tanh %202 : vector<2x32xf32>
    %210 = arith.mulf %208, %209 : vector<2x32xf32>
    %211 = tpu.concatenate %210, %202 in 1 : vector<2x32xf32>, vector<2x32xf32> -> vector<2x64xf32>
    %212 = arith.index_cast %c5_i32 : i32 to index
    %c0_52 = arith.constant 0 : index
    %c0_53 = arith.constant 0 : index
    %213 = vector.load %arg3[%212, %c0_52, %c0_53] : memref<8x2x64xf32, #tpu.memory_space<vmem>>, vector<1x2x64xf32>
    %214 = vector.shape_cast %213 : vector<1x2x64xf32> to vector<2x64xf32>
    %215 = vector.shape_cast %211 : vector<2x64xf32> to vector<1x2x64xf32>
    tpu.vector_store %arg3[%212, %c0_52, %c0_53], %215 {strides = array<i32>} : memref<8x2x64xf32, #tpu.memory_space<vmem>>, vector<1x2x64xf32>,
    %c6_i32 = arith.constant 6 : i32
    %216 = arith.index_cast %c6_i32 : i32 to index
    %c0_54 = arith.constant 0 : index
    %c0_55 = arith.constant 0 : index
    %217 = vector.load %arg1[%216, %c0_54, %c0_55] : memref<8x2x128xf32, #tpu.memory_space<vmem>>, vector<1x2x128xf32>
    %218 = vector.shape_cast %217 : vector<1x2x128xf32> to vector<2x128xf32>
    %cst_56 = arith.constant dense<0.000000e+00> : vector<2x128xf32>
    %219 = tpu.matmul %210, %3, %cst_56 {dimension_numbers = #tpu.dot_dimension_numbers<[1], [0], [0], [1], [0, 0, 1, 1], [], []>} : vector<2x32xf32>, vector<32x128xf32>, vector<2x128xf32> -> vector<2x128xf32>
    %220 = arith.addf %218, %219 : vector<2x128xf32>
    %221 = vector.extract_strided_slice %220 {offsets = [0, 0], sizes = [2, 32], strides = [1, 1]} : vector<2x128xf32> to vector<2x32xf32>
    %222 = arith.negf %221 : vector<2x32xf32>
    %223 = math.exp %222 : vector<2x32xf32>
    %cst_57 = arith.constant 1.000000e+00 : f32
    %224 = vector.broadcast %cst_57 : f32 to vector<2x32xf32>
    %225 = arith.addf %224, %223 : vector<2x32xf32>
    %226 = arith.divf %224, %225 : vector<2x32xf32>
    %227 = vector.extract_strided_slice %220 {offsets = [0, 32], sizes = [2, 32], strides = [1, 1]} : vector<2x128xf32> to vector<2x32xf32>
    %228 = arith.negf %227 : vector<2x32xf32>
    %229 = math.exp %228 : vector<2x32xf32>
    %cst_58 = arith.constant 1.000000e+00 : f32
    %230 = vector.broadcast %cst_58 : f32 to vector<2x32xf32>
    %231 = arith.addf %230, %229 : vector<2x32xf32>
    %232 = arith.divf %230, %231 : vector<2x32xf32>
    %233 = arith.mulf %232, %202 : vector<2x32xf32>
    %234 = vector.extract_strided_slice %220 {offsets = [0, 64], sizes = [2, 32], strides = [1, 1]} : vector<2x128xf32> to vector<2x32xf32>
    %235 = math.tanh %234 : vector<2x32xf32>
    %236 = arith.mulf %226, %235 : vector<2x32xf32>
    %237 = arith.addf %233, %236 : vector<2x32xf32>
    %238 = vector.extract_strided_slice %220 {offsets = [0, 96], sizes = [2, 32], strides = [1, 1]} : vector<2x128xf32> to vector<2x32xf32>
    %239 = arith.negf %238 : vector<2x32xf32>
    %240 = math.exp %239 : vector<2x32xf32>
    %cst_59 = arith.constant 1.000000e+00 : f32
    %241 = vector.broadcast %cst_59 : f32 to vector<2x32xf32>
    %242 = arith.addf %241, %240 : vector<2x32xf32>
    %243 = arith.divf %241, %242 : vector<2x32xf32>
    %244 = math.tanh %237 : vector<2x32xf32>
    %245 = arith.mulf %243, %244 : vector<2x32xf32>
    %246 = tpu.concatenate %245, %237 in 1 : vector<2x32xf32>, vector<2x32xf32> -> vector<2x64xf32>
    %247 = arith.index_cast %c6_i32 : i32 to index
    %c0_60 = arith.constant 0 : index
    %c0_61 = arith.constant 0 : index
    %248 = vector.load %arg3[%247, %c0_60, %c0_61] : memref<8x2x64xf32, #tpu.memory_space<vmem>>, vector<1x2x64xf32>
    %249 = vector.shape_cast %248 : vector<1x2x64xf32> to vector<2x64xf32>
    %250 = vector.shape_cast %246 : vector<2x64xf32> to vector<1x2x64xf32>
    tpu.vector_store %arg3[%247, %c0_60, %c0_61], %250 {strides = array<i32>} : memref<8x2x64xf32, #tpu.memory_space<vmem>>, vector<1x2x64xf32>,
    %c7_i32 = arith.constant 7 : i32
    %251 = arith.index_cast %c7_i32 : i32 to index
    %c0_62 = arith.constant 0 : index
    %c0_63 = arith.constant 0 : index
    %252 = vector.load %arg1[%251, %c0_62, %c0_63] : memref<8x2x128xf32, #tpu.memory_space<vmem>>, vector<1x2x128xf32>
    %253 = vector.shape_cast %252 : vector<1x2x128xf32> to vector<2x128xf32>
    %cst_64 = arith.constant dense<0.000000e+00> : vector<2x128xf32>
    %254 = tpu.matmul %245, %3, %cst_64 {dimension_numbers = #tpu.dot_dimension_numbers<[1], [0], [0], [1], [0, 0, 1, 1], [], []>} : vector<2x32xf32>, vector<32x128xf32>, vector<2x128xf32> -> vector<2x128xf32>
    %255 = arith.addf %253, %254 : vector<2x128xf32>
    %256 = vector.extract_strided_slice %255 {offsets = [0, 0], sizes = [2, 32], strides = [1, 1]} : vector<2x128xf32> to vector<2x32xf32>
    %257 = arith.negf %256 : vector<2x32xf32>
    %258 = math.exp %257 : vector<2x32xf32>
    %cst_65 = arith.constant 1.000000e+00 : f32
    %259 = vector.broadcast %cst_65 : f32 to vector<2x32xf32>
    %260 = arith.addf %259, %258 : vector<2x32xf32>
    %261 = arith.divf %259, %260 : vector<2x32xf32>
    %262 = vector.extract_strided_slice %255 {offsets = [0, 32], sizes = [2, 32], strides = [1, 1]} : vector<2x128xf32> to vector<2x32xf32>
    %263 = arith.negf %262 : vector<2x32xf32>
    %264 = math.exp %263 : vector<2x32xf32>
    %cst_66 = arith.constant 1.000000e+00 : f32
    %265 = vector.broadcast %cst_66 : f32 to vector<2x32xf32>
    %266 = arith.addf %265, %264 : vector<2x32xf32>
    %267 = arith.divf %265, %266 : vector<2x32xf32>
    %268 = arith.mulf %267, %237 : vector<2x32xf32>
    %269 = vector.extract_strided_slice %255 {offsets = [0, 64], sizes = [2, 32], strides = [1, 1]} : vector<2x128xf32> to vector<2x32xf32>
    %270 = math.tanh %269 : vector<2x32xf32>
    %271 = arith.mulf %261, %270 : vector<2x32xf32>
    %272 = arith.addf %268, %271 : vector<2x32xf32>
    %273 = vector.extract_strided_slice %255 {offsets = [0, 96], sizes = [2, 32], strides = [1, 1]} : vector<2x128xf32> to vector<2x32xf32>
    %274 = arith.negf %273 : vector<2x32xf32>
    %275 = math.exp %274 : vector<2x32xf32>
    %cst_67 = arith.constant 1.000000e+00 : f32
    %276 = vector.broadcast %cst_67 : f32 to vector<2x32xf32>
    %277 = arith.addf %276, %275 : vector<2x32xf32>
    %278 = arith.divf %276, %277 : vector<2x32xf32>
    %279 = math.tanh %272 : vector<2x32xf32>
    %280 = arith.mulf %278, %279 : vector<2x32xf32>
    %281 = tpu.concatenate %280, %272 in 1 : vector<2x32xf32>, vector<2x32xf32> -> vector<2x64xf32>
    %282 = arith.index_cast %c7_i32 : i32 to index
    %c0_68 = arith.constant 0 : index
    %c0_69 = arith.constant 0 : index
    %283 = vector.load %arg3[%282, %c0_68, %c0_69] : memref<8x2x64xf32, #tpu.memory_space<vmem>>, vector<1x2x64xf32>
    %284 = vector.shape_cast %283 : vector<1x2x64xf32> to vector<2x64xf32>
    %285 = vector.shape_cast %281 : vector<2x64xf32> to vector<1x2x64xf32>
    tpu.vector_store %arg3[%282, %c0_68, %c0_69], %285 {strides = array<i32>} : memref<8x2x64xf32, #tpu.memory_space<vmem>>, vector<1x2x64xf32>,
    %c8_i32 = arith.constant 8 : i32
    %c0_70 = arith.constant 0 : index
    %c0_71 = arith.constant 0 : index
    %286 = vector.load %arg4[%c0_70, %c0_71] : memref<2x32xf32, #tpu.memory_space<vmem>>, vector<2x32xf32>
    tpu.vector_store %arg4[%c0_70, %c0_71], %280 {strides = array<i32>} : memref<2x32xf32, #tpu.memory_space<vmem>>, vector<2x32xf32>,
    %c0_72 = arith.constant 0 : index
    %c0_73 = arith.constant 0 : index
    %287 = vector.load %arg5[%c0_72, %c0_73] : memref<2x32xf32, #tpu.memory_space<vmem>>, vector<2x32xf32>
    tpu.vector_store %arg5[%c0_72, %c0_73], %272 {strides = array<i32>} : memref<2x32xf32, #tpu.memory_space<vmem>>, vector<2x32xf32>,
    return
  }
  func.func @transform_0(%arg0: i32) -> (i32, i32, i32) {
    %c0_i32 = arith.constant 0 : i32
    %c0_i32_0 = arith.constant 0 : i32
    %c0_i32_1 = arith.constant 0 : i32
    return %arg0, %c0_i32, %c0_i32_0 : i32, i32, i32
  }
  func.func @transform_1(%arg0: i32) -> (i32, i32) {
    %c0_i32 = arith.constant 0 : i32
    %c0_i32_0 = arith.constant 0 : i32
    %c0_i32_1 = arith.constant 0 : i32
    return %c0_i32, %c0_i32_0 : i32, i32
  }
  func.func @transform_2(%arg0: i32) -> (i32, i32, i32) {
    %c0_i32 = arith.constant 0 : i32
    %c0_i32_0 = arith.constant 0 : i32
    %c0_i32_1 = arith.constant 0 : i32
    return %arg0, %c0_i32, %c0_i32_0 : i32, i32, i32
  }
}

</mosaic_0001>

<llo_original>
// kernel: bilstm_forward.1
$region0: #{bilstm_forward.1}
  #allocation0 [shape = 'u32[]', space=smem, size = 0x4, offset = 0x4, fixed_abs, tag = 'smem constant byte address 0x4 - core index']
  #allocation1 [shape = 'u32[144,128]{1,0:T(1,128)}', space=vmem, size = 0x12000, scoped, tag = 'internal scratch']
  #allocation2 [shape = 'f32[2,32]{1,0:T(2,128)}', space=vmem, size = 0x400, scoped, tag = 'scratch operand']
  #allocation3 [shape = 'f32[2,32]{1,0:T(2,128)}', space=vmem, size = 0x400, scoped, tag = 'scratch operand']
  %s0 = inlined_call_operand.vmem [shape: f32[8,2,128], index: 0, kind: input, shape index: {}]
  %s1 = inlined_call_operand.vmem [shape: f32[32,128], index: 1, kind: input, shape index: {}]
  %s2 = inlined_call_operand.vmem [shape: f32[8,2,64], index: 2, kind: output, shape index: {}]
  %s3 = sld [smem:[#allocation0]]
  $region22: #{bilstm_forward.1} parent=0
    _
  %s5 = ssub.s32 1, %s3
  %s6 = scalar_select 0, %s5, %s3
  // Predicated region
  $region2: #{bilstm_forward.1} parent=0 // pred_check
    _
  $region3: #{bilstm_forward.1} parent=0 // pred_check_branch
    %8 = sbr.rel (0) target = $region5
  $region4: #{bilstm_forward.1} parent=0 // pred_region
    _
  $region5: #{bilstm_forward.1} parent=0 // pred_fallthru
    _
  // Predicated region
  $region6: #{bilstm_forward.1} parent=0 // pred_check
    _
  $region7: #{bilstm_forward.1} parent=0 // pred_check_branch
    %10 = sbr.rel (0) target = $region9
  $region8: #{bilstm_forward.1} parent=0 // pred_region
    _
  $region9: #{bilstm_forward.1} parent=0 // pred_fallthru
    _
  %p11 = scmp.eq.s32.totalorder 0, 0
  // Predicated region
  $region10: #{bilstm_forward.1} parent=0 // pred_check
    %p12 = pneg %p11
  $region11: #{bilstm_forward.1} parent=0 // pred_check_branch
    %14 = sbr.rel (%p12) target = $region13
  $region12: #{bilstm_forward.1} parent=0 // pred_region
    %vm15 = vcmask 254976
    %16 = vst.msk [vmem:[#allocation2] sm:$0x3] %vm15, 0.0
    %17 = vst.msk [vmem:[#allocation3] sm:$0x3] %vm15, 0.0
  $region13: #{bilstm_forward.1} parent=0 // pred_fallthru
    _
  %v18 = vld [vmem:[%s1] sm:$0xff]
  %v19 = vld [vmem:[%s1 + $0x8] sm:$0xff]
  %v20 = vld [vmem:[%s1 + $0x10] sm:$0xff]
  %v21 = vld [vmem:[%s1 + $0x18] sm:$0xff]
  %v22 = vld [vmem:[#allocation2] sm:$0x3]
  %v23 = vld [vmem:[#allocation3] sm:$0x3]
  %v24 = vld [vmem:[%s0] sm:$0x3]
  %vm25 = vcmask 261120
  %v27 = vsel %vm25, %v22, 0
  %29 = vmatprep.subr.mxu0 0.0
  %30 = vmatpush1.msra.mxu0 %v18
  %31 = vmatprep.subr.mxu0 0.0
  %32 = vmatpush1.msra.mxu0 %v19
  %33 = vmatprep.subr.mxu0 0.0
  %34 = vmatpush1.msra.mxu0 %v20
  %35 = vmatprep.subr.mxu0 0.0
  %36 = vmatpush1.msra.mxu0 %v21
  %37 = vmatprep.subr.mxu0 0.0
  %38 = vmatpush1.msra.mxu0 0.0
  %39 = vmatprep.subr.mxu0 0.0
  %40 = vmatpush1.msra.mxu0 0.0
  %41 = vmatprep.subr.mxu0 0.0
  %42 = vmatpush1.msra.mxu0 0.0
  %43 = vmatprep.subr.mxu0 0.0
  %44 = vmatpush1.msra.mxu0 0.0
  %45 = vmatprep.subr.mxu0 0.0
  %46 = vmatpush1.msra.mxu0 0.0
  %47 = vmatprep.subr.mxu0 0.0
  %48 = vmatpush1.msra.mxu0 0.0
  %49 = vmatprep.subr.mxu0 0.0
  %50 = vmatpush1.msra.mxu0 0.0
  %51 = vmatprep.subr.mxu0 0.0
  %52 = vmatpush1.msra.mxu0 0.0
  %53 = vmatprep.subr.mxu0 0.0
  %54 = vmatpush1.msra.mxu0 0.0
  %55 = vmatprep.subr.mxu0 0.0
  %56 = vmatpush1.msra.mxu0 0.0
  %57 = vmatprep.subr.mxu0 0.0
  %58 = vmatpush1.msra.mxu0 0.0
  %59 = vmatprep.subr.mxu0 0.0
  %60 = vmatpush1.msra.mxu0 0.0
  %61 = vmatprep.subr.mxu0 0.0
  %62 = vmatpush1.msra.mxu0 0.0
  %63 = vmatprep.subr.mxu0 0.0
  %64 = vmatpush1.msra.mxu0 0.0
  %65 = vmatprep.subr.mxu0 0.0
  %66 = vmatpush1.msra.mxu0 0.0
  %67 = vmatprep.subr.mxu0 0.0
  %68 = vmatpush1.msra.mxu0 0.0
  %69 = vmatprep.subr.mxu0 0.0
  %70 = vmatpush1.msra.mxu0 0.0
  %71 = vmatprep.subr.mxu0 0.0
  %72 = vmatpush1.msra.mxu0 0.0
  %73 = vmatprep.subr.mxu0 0.0
  %74 = vmatpush1.msra.mxu0 0.0
  %75 = vmatprep.subr.mxu0 0.0
  %76 = vmatpush1.msra.mxu0 0.0
  %77 = vmatprep.subr.mxu0 0.0
  %78 = vmatpush1.msra.mxu0 0.0
  %79 = vmatprep.subr.mxu0 0.0
  %80 = vmatpush1.msra.mxu0 0.0
  %81 = vmatprep.subr.mxu0 0.0
  %82 = vmatpush1.msra.mxu0 0.0
  %83 = vmatprep.subr.mxu0 0.0
  %84 = vmatpush1.msra.mxu0 0.0
  %85 = vmatprep.subr.mxu0 0.0
  %86 = vmatpush1.msra.mxu0 0.0
  %87 = vmatprep.subr.mxu0 0.0
  %88 = vmatpush1.msra.mxu0 0.0
  %89 = vmatprep.subr.mxu0 0.0
  %90 = vmatpush1.msra.mxu0 0.0
  %91 = vmatprep.subr.mxu0 0.0
  %92 = vmatpush1.msra.mxu0 0.0
  %93 = vmatprep.mubr.f32.mxu0 0.0
  %94 = vmatmul.mubr.f32.gmra.mrb[0].mxu0 %v27
  %v95 = vpop.f32.mrb[0].mxu0
  %v96 = vadd.f32 0.0, %v95
  %v97 = vpop.f32.mrb[0].mxu0
  %98 = vdwg.mxu0
  %v99 = vadd.f32 %v24, %v96
  %v100 = vxor.u32 %v99, 2147483648
  %v101 = vmul.f32 %v100, 1.442695
  %v102 = vpow.pop %v101
  %v103 = vadd.f32 %v102, 1.0
  %v104 = vrcp.pop %v103
  %v105 = vmul.f32 1.0, %v104
  %107 = vrot.lane.b32.xlu0 %v23, 32
  %v108 = vpop.permute.xlu0 %107
  %v110 = vmul.f32 %v105, %v108
  %v111 = vtanh.pop %v99
  %113 = vrot.lane.b32.xlu0 %v111, 64
  %v114 = vpop.permute.xlu0 %113
  %v116 = vmul.f32 %v105, %v114
  %118 = vrot.lane.b32.xlu0 %v116, 32
  %v119 = vpop.permute.xlu0 %118
  %v121 = vadd.f32 %v110, %v119
  %v122 = vtanh.pop %v121
  %124 = vrot.lane.b32.xlu0 %v122, 64
  %v125 = vpop.permute.xlu0 %124
  %v127 = vmul.f32 %v105, %v125
  %129 = vrot.lane.b32.xlu0 %v127, 32
  %v130 = vpop.permute.xlu0 %129
  %v132 = vsel %vm25, %v130, %v121
  %vm133 = vcmask 517120
  %134 = vst.msk [vmem:[%s2] sm:$0x3] %vm133, %v132
  %s135 = scalar_lea.vmem %s0, 2
  %v136 = vld [vmem:[%s135] sm:$0x3]
  %v137 = vsel %vm25, %v130, 0
  %139 = vmatprep.subr.mxu0 0.0
  %140 = vmatpush1.msra.mxu0 %v18
  %141 = vmatprep.subr.mxu0 0.0
  %142 = vmatpush1.msra.mxu0 %v19
  %143 = vmatprep.subr.mxu0 0.0
  %144 = vmatpush1.msra.mxu0 %v20
  %145 = vmatprep.subr.mxu0 0.0
  %146 = vmatpush1.msra.mxu0 %v21
  %147 = vmatprep.subr.mxu0 0.0
  %148 = vmatpush1.msra.mxu0 0.0
  %149 = vmatprep.subr.mxu0 0.0
  %150 = vmatpush1.msra.mxu0 0.0
  %151 = vmatprep.subr.mxu0 0.0
  %152 = vmatpush1.msra.mxu0 0.0
  %153 = vmatprep.subr.mxu0 0.0
  %154 = vmatpush1.msra.mxu0 0.0
  %155 = vmatprep.subr.mxu0 0.0
  %156 = vmatpush1.msra.mxu0 0.0
  %157 = vmatprep.subr.mxu0 0.0
  %158 = vmatpush1.msra.mxu0 0.0
  %159 = vmatprep.subr.mxu0 0.0
  %160 = vmatpush1.msra.mxu0 0.0
  %161 = vmatprep.subr.mxu0 0.0
  %162 = vmatpush1.msra.mxu0 0.0
  %163 = vmatprep.subr.mxu0 0.0
  %164 = vmatpush1.msra.mxu0 0.0
  %165 = vmatprep.subr.mxu0 0.0
  %166 = vmatpush1.msra.mxu0 0.0
  %167 = vmatprep.subr.mxu0 0.0
  %168 = vmatpush1.msra.mxu0 0.0
  %169 = vmatprep.subr.mxu0 0.0
  %170 = vmatpush1.msra.mxu0 0.0
  %171 = vmatprep.subr.mxu0 0.0
  %172 = vmatpush1.msra.mxu0 0.0
  %173 = vmatprep.subr.mxu0 0.0
  %174 = vmatpush1.msra.mxu0 0.0
  %175 = vmatprep.subr.mxu0 0.0
  %176 = vmatpush1.msra.mxu0 0.0
  %177 = vmatprep.subr.mxu0 0.0
  %178 = vmatpush1.msra.mxu0 0.0
  %179 = vmatprep.subr.mxu0 0.0
  %180 = vmatpush1.msra.mxu0 0.0
  %181 = vmatprep.subr.mxu0 0.0
  %182 = vmatpush1.msra.mxu0 0.0
  %183 = vmatprep.subr.mxu0 0.0
  %184 = vmatpush1.msra.mxu0 0.0
  %185 = vmatprep.subr.mxu0 0.0
  %186 = vmatpush1.msra.mxu0 0.0
  %187 = vmatprep.subr.mxu0 0.0
  %188 = vmatpush1.msra.mxu0 0.0
  %189 = vmatprep.subr.mxu0 0.0
  %190 = vmatpush1.msra.mxu0 0.0
  %191 = vmatprep.subr.mxu0 0.0
  %192 = vmatpush1.msra.mxu0 0.0
  %193 = vmatprep.subr.mxu0 0.0
  %194 = vmatpush1.msra.mxu0 0.0
  %195 = vmatprep.subr.mxu0 0.0
  %196 = vmatpush1.msra.mxu0 0.0
  %197 = vmatprep.subr.mxu0 0.0
  %198 = vmatpush1.msra.mxu0 0.0
  %199 = vmatprep.subr.mxu0 0.0
  %200 = vmatpush1.msra.mxu0 0.0
  %201 = vmatprep.subr.mxu0 0.0
  %202 = vmatpush1.msra.mxu0 0.0
  %203 = vmatprep.mubr.f32.mxu0 0.0
  %204 = vmatmul.mubr.f32.gmra.mrb[0].mxu0 %v137
  %v205 = vpop.f32.mrb[0].mxu0
  %v206 = vadd.f32 0.0, %v205
  %v207 = vpop.f32.mrb[0].mxu0
  %208 = vdwg.mxu0
  %v209 = vadd.f32 %v136, %v206
  %v210 = vxor.u32 %v209, 2147483648
  %v211 = vmul.f32 %v210, 1.442695
  %v212 = vpow.pop %v211
  %v213 = vadd.f32 %v212, 1.0
  %v214 = vrcp.pop %v213
  %v215 = vmul.f32 1.0, %v214
  %v216 = vmul.f32 %v215, %v121
  %v217 = vtanh.pop %v209
  %219 = vrot.lane.b32.xlu0 %v217, 64
  %v220 = vpop.permute.xlu0 %219
  %v222 = vmul.f32 %v215, %v220
  %224 = vrot.lane.b32.xlu0 %v222, 32
  %v225 = vpop.permute.xlu0 %224
  %v227 = vadd.f32 %v216, %v225
  %v228 = vtanh.pop %v227
  %230 = vrot.lane.b32.xlu0 %v228, 64
  %v231 = vpop.permute.xlu0 %230
  %v233 = vmul.f32 %v215, %v231
  %235 = vrot.lane.b32.xlu0 %v233, 32
  %v236 = vpop.permute.xlu0 %235
  %v238 = vsel %vm25, %v236, %v227
  %s239 = scalar_lea.vmem %s2, 2
  %240 = vst.msk [vmem:[%s239] sm:$0x3] %vm133, %v238
  %s241 = scalar_lea.vmem %s0, 4
  %v242 = vld [vmem:[%s241] sm:$0x3]
  %v243 = vsel %vm25, %v236, 0
  %245 = vmatprep.subr.mxu0 0.0
  %246 = vmatpush1.msra.mxu0 %v18
  %247 = vmatprep.subr.mxu0 0.0
  %248 = vmatpush1.msra.mxu0 %v19
  %249 = vmatprep.subr.mxu0 0.0
  %250 = vmatpush1.msra.mxu0 %v20
  %251 = vmatprep.subr.mxu0 0.0
  %252 = vmatpush1.msra.mxu0 %v21
  %253 = vmatprep.subr.mxu0 0.0
  %254 = vmatpush1.msra.mxu0 0.0
  %255 = vmatprep.subr.mxu0 0.0
  %256 = vmatpush1.msra.mxu0 0.0
  %257 = vmatprep.subr.mxu0 0.0
  %258 = vmatpush1.msra.mxu0 0.0
  %259 = vmatprep.subr.mxu0 0.0
  %260 = vmatpush1.msra.mxu0 0.0
  %261 = vmatprep.subr.mxu0 0.0
  %262 = vmatpush1.msra.mxu0 0.0
  %263 = vmatprep.subr.mxu0 0.0
  %264 = vmatpush1.msra.mxu0 0.0
  %265 = vmatprep.subr.mxu0 0.0
  %266 = vmatpush1.msra.mxu0 0.0
  %267 = vmatprep.subr.mxu0 0.0
  %268 = vmatpush1.msra.mxu0 0.0
  %269 = vmatprep.subr.mxu0 0.0
  %270 = vmatpush1.msra.mxu0 0.0
  %271 = vmatprep.subr.mxu0 0.0
  %272 = vmatpush1.msra.mxu0 0.0
  %273 = vmatprep.subr.mxu0 0.0
  %274 = vmatpush1.msra.mxu0 0.0
  %275 = vmatprep.subr.mxu0 0.0
  %276 = vmatpush1.msra.mxu0 0.0
  %277 = vmatprep.subr.mxu0 0.0
  %278 = vmatpush1.msra.mxu0 0.0
  %279 = vmatprep.subr.mxu0 0.0
  %280 = vmatpush1.msra.mxu0 0.0
  %281 = vmatprep.subr.mxu0 0.0
  %282 = vmatpush1.msra.mxu0 0.0
  %283 = vmatprep.subr.mxu0 0.0
  %284 = vmatpush1.msra.mxu0 0.0
  %285 = vmatprep.subr.mxu0 0.0
  %286 = vmatpush1.msra.mxu0 0.0
  %287 = vmatprep.subr.mxu0 0.0
  %288 = vmatpush1.msra.mxu0 0.0
  %289 = vmatprep.subr.mxu0 0.0
  %290 = vmatpush1.msra.mxu0 0.0
  %291 = vmatprep.subr.mxu0 0.0
  %292 = vmatpush1.msra.mxu0 0.0
  %293 = vmatprep.subr.mxu0 0.0
  %294 = vmatpush1.msra.mxu0 0.0
  %295 = vmatprep.subr.mxu0 0.0
  %296 = vmatpush1.msra.mxu0 0.0
  %297 = vmatprep.subr.mxu0 0.0
  %298 = vmatpush1.msra.mxu0 0.0
  %299 = vmatprep.subr.mxu0 0.0
  %300 = vmatpush1.msra.mxu0 0.0
  %301 = vmatprep.subr.mxu0 0.0
  %302 = vmatpush1.msra.mxu0 0.0
  %303 = vmatprep.subr.mxu0 0.0
  %304 = vmatpush1.msra.mxu0 0.0
  %305 = vmatprep.subr.mxu0 0.0
  %306 = vmatpush1.msra.mxu0 0.0
  %307 = vmatprep.subr.mxu0 0.0
  %308 = vmatpush1.msra.mxu0 0.0
  %309 = vmatprep.mubr.f32.mxu0 0.0
  %310 = vmatmul.mubr.f32.gmra.mrb[0].mxu0 %v243
  %v311 = vpop.f32.mrb[0].mxu0
  %v312 = vadd.f32 0.0, %v311
  %v313 = vpop.f32.mrb[0].mxu0
  %314 = vdwg.mxu0
  %v315 = vadd.f32 %v242, %v312
  %v316 = vxor.u32 %v315, 2147483648
  %v317 = vmul.f32 %v316, 1.442695
  %v318 = vpow.pop %v317
  %v319 = vadd.f32 %v318, 1.0
  %v320 = vrcp.pop %v319
  %v321 = vmul.f32 1.0, %v320
  %v322 = vmul.f32 %v321, %v227
  %v323 = vtanh.pop %v315
  %325 = vrot.lane.b32.xlu0 %v323, 64
  %v326 = vpop.permute.xlu0 %325
  %v328 = vmul.f32 %v321, %v326
  %330 = vrot.lane.b32.xlu0 %v328, 32
  %v331 = vpop.permute.xlu0 %330
  %v333 = vadd.f32 %v322, %v331
  %v334 = vtanh.pop %v333
  %336 = vrot.lane.b32.xlu0 %v334, 64
  %v337 = vpop.permute.xlu0 %336
  %v339 = vmul.f32 %v321, %v337
  %341 = vrot.lane.b32.xlu0 %v339, 32
  %v342 = vpop.permute.xlu0 %341
  %v344 = vsel %vm25, %v342, %v333
  %s345 = scalar_lea.vmem %s2, 4
  %346 = vst.msk [vmem:[%s345] sm:$0x3] %vm133, %v344
  %s347 = scalar_lea.vmem %s0, 6
  %v348 = vld [vmem:[%s347] sm:$0x3]
  %v349 = vsel %vm25, %v342, 0
  %351 = vmatprep.subr.mxu0 0.0
  %352 = vmatpush1.msra.mxu0 %v18
  %353 = vmatprep.subr.mxu0 0.0
  %354 = vmatpush1.msra.mxu0 %v19
  %355 = vmatprep.subr.mxu0 0.0
  %356 = vmatpush1.msra.mxu0 %v20
  %357 = vmatprep.subr.mxu0 0.0
  %358 = vmatpush1.msra.mxu0 %v21
  %359 = vmatprep.subr.mxu0 0.0
  %360 = vmatpush1.msra.mxu0 0.0
  %361 = vmatprep.subr.mxu0 0.0
  %362 = vmatpush1.msra.mxu0 0.0
  %363 = vmatprep.subr.mxu0 0.0
  %364 = vmatpush1.msra.mxu0 0.0
  %365 = vmatprep.subr.mxu0 0.0
  %366 = vmatpush1.msra.mxu0 0.0
  %367 = vmatprep.subr.mxu0 0.0
  %368 = vmatpush1.msra.mxu0 0.0
  %369 = vmatprep.subr.mxu0 0.0
  %370 = vmatpush1.msra.mxu0 0.0
  %371 = vmatprep.subr.mxu0 0.0
  %372 = vmatpush1.msra.mxu0 0.0
  %373 = vmatprep.subr.mxu0 0.0
  %374 = vmatpush1.msra.mxu0 0.0
  %375 = vmatprep.subr.mxu0 0.0
  %376 = vmatpush1.msra.mxu0 0.0
  %377 = vmatprep.subr.mxu0 0.0
  %378 = vmatpush1.msra.mxu0 0.0
  %379 = vmatprep.subr.mxu0 0.0
  %380 = vmatpush1.msra.mxu0 0.0
  %381 = vmatprep.subr.mxu0 0.0
  %382 = vmatpush1.msra.mxu0 0.0
  %383 = vmatprep.subr.mxu0 0.0
  %384 = vmatpush1.msra.mxu0 0.0
  %385 = vmatprep.subr.mxu0 0.0
  %386 = vmatpush1.msra.mxu0 0.0
  %387 = vmatprep.subr.mxu0 0.0
  %388 = vmatpush1.msra.mxu0 0.0
  %389 = vmatprep.subr.mxu0 0.0
  %390 = vmatpush1.msra.mxu0 0.0
  %391 = vmatprep.subr.mxu0 0.0
  %392 = vmatpush1.msra.mxu0 0.0
  %393 = vmatprep.subr.mxu0 0.0
  %394 = vmatpush1.msra.mxu0 0.0
  %395 = vmatprep.subr.mxu0 0.0
  %396 = vmatpush1.msra.mxu0 0.0
  %397 = vmatprep.subr.mxu0 0.0
  %398 = vmatpush1.msra.mxu0 0.0
  %399 = vmatprep.subr.mxu0 0.0
  %400 = vmatpush1.msra.mxu0 0.0
  %401 = vmatprep.subr.mxu0 0.0
  %402 = vmatpush1.msra.mxu0 0.0
  %403 = vmatprep.subr.mxu0 0.0
  %404 = vmatpush1.msra.mxu0 0.0
  %405 = vmatprep.subr.mxu0 0.0
  %406 = vmatpush1.msra.mxu0 0.0
  %407 = vmatprep.subr.mxu0 0.0
  %408 = vmatpush1.msra.mxu0 0.0
  %409 = vmatprep.subr.mxu0 0.0
  %410 = vmatpush1.msra.mxu0 0.0
  %411 = vmatprep.subr.mxu0 0.0
  %412 = vmatpush1.msra.mxu0 0.0
  %413 = vmatprep.subr.mxu0 0.0
  %414 = vmatpush1.msra.mxu0 0.0
  %415 = vmatprep.mubr.f32.mxu0 0.0
  %416 = vmatmul.mubr.f32.gmra.mrb[0].mxu0 %v349
  %v417 = vpop.f32.mrb[0].mxu0
  %v418 = vadd.f32 0.0, %v417
  %v419 = vpop.f32.mrb[0].mxu0
  %420 = vdwg.mxu0
  %v421 = vadd.f32 %v348, %v418
  %v422 = vxor.u32 %v421, 2147483648
  %v423 = vmul.f32 %v422, 1.442695
  %v424 = vpow.pop %v423
  %v425 = vadd.f32 %v424, 1.0
  %v426 = vrcp.pop %v425
  %v427 = vmul.f32 1.0, %v426
  %v428 = vmul.f32 %v427, %v333
  %v429 = vtanh.pop %v421
  %431 = vrot.lane.b32.xlu0 %v429, 64
  %v432 = vpop.permute.xlu0 %431
  %v434 = vmul.f32 %v427, %v432
  %436 = vrot.lane.b32.xlu0 %v434, 32
  %v437 = vpop.permute.xlu0 %436
  %v439 = vadd.f32 %v428, %v437
  %v440 = vtanh.pop %v439
  %442 = vrot.lane.b32.xlu0 %v440, 64
  %v443 = vpop.permute.xlu0 %442
  %v445 = vmul.f32 %v427, %v443
  %447 = vrot.lane.b32.xlu0 %v445, 32
  %v448 = vpop.permute.xlu0 %447
  %v450 = vsel %vm25, %v448, %v439
  %s451 = scalar_lea.vmem %s2, 6
  %452 = vst.msk [vmem:[%s451] sm:$0x3] %vm133, %v450
  %s453 = scalar_lea.vmem %s0, 8
  %v454 = vld [vmem:[%s453] sm:$0x3]
  %v455 = vsel %vm25, %v448, 0
  %457 = vmatprep.subr.mxu0 0.0
  %458 = vmatpush1.msra.mxu0 %v18
  %459 = vmatprep.subr.mxu0 0.0
  %460 = vmatpush1.msra.mxu0 %v19
  %461 = vmatprep.subr.mxu0 0.0
  %462 = vmatpush1.msra.mxu0 %v20
  %463 = vmatprep.subr.mxu0 0.0
  %464 = vmatpush1.msra.mxu0 %v21
  %465 = vmatprep.subr.mxu0 0.0
  %466 = vmatpush1.msra.mxu0 0.0
  %467 = vmatprep.subr.mxu0 0.0
  %468 = vmatpush1.msra.mxu0 0.0
  %469 = vmatprep.subr.mxu0 0.0
  %470 = vmatpush1.msra.mxu0 0.0
  %471 = vmatprep.subr.mxu0 0.0
  %472 = vmatpush1.msra.mxu0 0.0
  %473 = vmatprep.subr.mxu0 0.0
  %474 = vmatpush1.msra.mxu0 0.0
  %475 = vmatprep.subr.mxu0 0.0
  %476 = vmatpush1.msra.mxu0 0.0
  %477 = vmatprep.subr.mxu0 0.0
  %478 = vmatpush1.msra.mxu0 0.0
  %479 = vmatprep.subr.mxu0 0.0
  %480 = vmatpush1.msra.mxu0 0.0
  %481 = vmatprep.subr.mxu0 0.0
  %482 = vmatpush1.msra.mxu0 0.0
  %483 = vmatprep.subr.mxu0 0.0
  %484 = vmatpush1.msra.mxu0 0.0
  %485 = vmatprep.subr.mxu0 0.0
  %486 = vmatpush1.msra.mxu0 0.0
  %487 = vmatprep.subr.mxu0 0.0
  %488 = vmatpush1.msra.mxu0 0.0
  %489 = vmatprep.subr.mxu0 0.0
  %490 = vmatpush1.msra.mxu0 0.0
  %491 = vmatprep.subr.mxu0 0.0
  %492 = vmatpush1.msra.mxu0 0.0
  %493 = vmatprep.subr.mxu0 0.0
  %494 = vmatpush1.msra.mxu0 0.0
  %495 = vmatprep.subr.mxu0 0.0
  %496 = vmatpush1.msra.mxu0 0.0
  %497 = vmatprep.subr.mxu0 0.0
  %498 = vmatpush1.msra.mxu0 0.0
  %499 = vmatprep.subr.mxu0 0.0
  %500 = vmatpush1.msra.mxu0 0.0
  %501 = vmatprep.subr.mxu0 0.0
  %502 = vmatpush1.msra.mxu0 0.0
  %503 = vmatprep.subr.mxu0 0.0
  %504 = vmatpush1.msra.mxu0 0.0
  %505 = vmatprep.subr.mxu0 0.0
  %506 = vmatpush1.msra.mxu0 0.0
  %507 = vmatprep.subr.mxu0 0.0
  %508 = vmatpush1.msra.mxu0 0.0
  %509 = vmatprep.subr.mxu0 0.0
  %510 = vmatpush1.msra.mxu0 0.0
  %511 = vmatprep.subr.mxu0 0.0
  %512 = vmatpush1.msra.mxu0 0.0
  %513 = vmatprep.subr.mxu0 0.0
  %514 = vmatpush1.msra.mxu0 0.0
  %515 = vmatprep.subr.mxu0 0.0
  %516 = vmatpush1.msra.mxu0 0.0
  %517 = vmatprep.subr.mxu0 0.0
  %518 = vmatpush1.msra.mxu0 0.0
  %519 = vmatprep.subr.mxu0 0.0
  %520 = vmatpush1.msra.mxu0 0.0
  %521 = vmatprep.mubr.f32.mxu0 0.0
  %522 = vmatmul.mubr.f32.gmra.mrb[0].mxu0 %v455
  %v523 = vpop.f32.mrb[0].mxu0
  %v524 = vadd.f32 0.0, %v523
  %v525 = vpop.f32.mrb[0].mxu0
  %526 = vdwg.mxu0
  %v527 = vadd.f32 %v454, %v524
  %v528 = vxor.u32 %v527, 2147483648
  %v529 = vmul.f32 %v528, 1.442695
  %v530 = vpow.pop %v529
  %v531 = vadd.f32 %v530, 1.0
  %v532 = vrcp.pop %v531
  %v533 = vmul.f32 1.0, %v532
  %v534 = vmul.f32 %v533, %v439
  %v535 = vtanh.pop %v527
  %537 = vrot.lane.b32.xlu0 %v535, 64
  %v538 = vpop.permute.xlu0 %537
  %v540 = vmul.f32 %v533, %v538
  %542 = vrot.lane.b32.xlu0 %v540, 32
  %v543 = vpop.permute.xlu0 %542
  %v545 = vadd.f32 %v534, %v543
  %v546 = vtanh.pop %v545
  %548 = vrot.lane.b32.xlu0 %v546, 64
  %v549 = vpop.permute.xlu0 %548
  %v551 = vmul.f32 %v533, %v549
  %553 = vrot.lane.b32.xlu0 %v551, 32
  %v554 = vpop.permute.xlu0 %553
  %v556 = vsel %vm25, %v554, %v545
  %s557 = scalar_lea.vmem %s2, 8
  %558 = vst.msk [vmem:[%s557] sm:$0x3] %vm133, %v556
  %s559 = scalar_lea.vmem %s0, 10
  %v560 = vld [vmem:[%s559] sm:$0x3]
  %v561 = vsel %vm25, %v554, 0
  %563 = vmatprep.subr.mxu0 0.0
  %564 = vmatpush1.msra.mxu0 %v18
  %565 = vmatprep.subr.mxu0 0.0
  %566 = vmatpush1.msra.mxu0 %v19
  %567 = vmatprep.subr.mxu0 0.0
  %568 = vmatpush1.msra.mxu0 %v20
  %569 = vmatprep.subr.mxu0 0.0
  %570 = vmatpush1.msra.mxu0 %v21
  %571 = vmatprep.subr.mxu0 0.0
  %572 = vmatpush1.msra.mxu0 0.0
  %573 = vmatprep.subr.mxu0 0.0
  %574 = vmatpush1.msra.mxu0 0.0
  %575 = vmatprep.subr.mxu0 0.0
  %576 = vmatpush1.msra.mxu0 0.0
  %577 = vmatprep.subr.mxu0 0.0
  %578 = vmatpush1.msra.mxu0 0.0
  %579 = vmatprep.subr.mxu0 0.0
  %580 = vmatpush1.msra.mxu0 0.0
  %581 = vmatprep.subr.mxu0 0.0
  %582 = vmatpush1.msra.mxu0 0.0
  %583 = vmatprep.subr.mxu0 0.0
  %584 = vmatpush1.msra.mxu0 0.0
  %585 = vmatprep.subr.mxu0 0.0
  %586 = vmatpush1.msra.mxu0 0.0
  %587 = vmatprep.subr.mxu0 0.0
  %588 = vmatpush1.msra.mxu0 0.0
  %589 = vmatprep.subr.mxu0 0.0
  %590 = vmatpush1.msra.mxu0 0.0
  %591 = vmatprep.subr.mxu0 0.0
  %592 = vmatpush1.msra.mxu0 0.0
  %593 = vmatprep.subr.mxu0 0.0
  %594 = vmatpush1.msra.mxu0 0.0
  %595 = vmatprep.subr.mxu0 0.0
  %596 = vmatpush1.msra.mxu0 0.0
  %597 = vmatprep.subr.mxu0 0.0
  %598 = vmatpush1.msra.mxu0 0.0
  %599 = vmatprep.subr.mxu0 0.0
  %600 = vmatpush1.msra.mxu0 0.0
  %601 = vmatprep.subr.mxu0 0.0
  %602 = vmatpush1.msra.mxu0 0.0
  %603 = vmatprep.subr.mxu0 0.0
  %604 = vmatpush1.msra.mxu0 0.0
  %605 = vmatprep.subr.mxu0 0.0
  %606 = vmatpush1.msra.mxu0 0.0
  %607 = vmatprep.subr.mxu0 0.0
  %608 = vmatpush1.msra.mxu0 0.0
  %609 = vmatprep.subr.mxu0 0.0
  %610 = vmatpush1.msra.mxu0 0.0
  %611 = vmatprep.subr.mxu0 0.0
  %612 = vmatpush1.msra.mxu0 0.0
  %613 = vmatprep.subr.mxu0 0.0
  %614 = vmatpush1.msra.mxu0 0.0
  %615 = vmatprep.subr.mxu0 0.0
  %616 = vmatpush1.msra.mxu0 0.0
  %617 = vmatprep.subr.mxu0 0.0
  %618 = vmatpush1.msra.mxu0 0.0
  %619 = vmatprep.subr.mxu0 0.0
  %620 = vmatpush1.msra.mxu0 0.0
  %621 = vmatprep.subr.mxu0 0.0
  %622 = vmatpush1.msra.mxu0 0.0
  %623 = vmatprep.subr.mxu0 0.0
  %624 = vmatpush1.msra.mxu0 0.0
  %625 = vmatprep.subr.mxu0 0.0
  %626 = vmatpush1.msra.mxu0 0.0
  %627 = vmatprep.mubr.f32.mxu0 0.0
  %628 = vmatmul.mubr.f32.gmra.mrb[0].mxu0 %v561
  %v629 = vpop.f32.mrb[0].mxu0
  %v630 = vadd.f32 0.0, %v629
  %v631 = vpop.f32.mrb[0].mxu0
  %632 = vdwg.mxu0
  %v633 = vadd.f32 %v560, %v630
  %v634 = vxor.u32 %v633, 2147483648
  %v635 = vmul.f32 %v634, 1.442695
  %v636 = vpow.pop %v635
  %v637 = vadd.f32 %v636, 1.0
  %v638 = vrcp.pop %v637
  %v639 = vmul.f32 1.0, %v638
  %v640 = vmul.f32 %v639, %v545
  %v641 = vtanh.pop %v633
  %643 = vrot.lane.b32.xlu0 %v641, 64
  %v644 = vpop.permute.xlu0 %643
  %v646 = vmul.f32 %v639, %v644
  %648 = vrot.lane.b32.xlu0 %v646, 32
  %v649 = vpop.permute.xlu0 %648
  %v651 = vadd.f32 %v640, %v649
  %v652 = vtanh.pop %v651
  %654 = vrot.lane.b32.xlu0 %v652, 64
  %v655 = vpop.permute.xlu0 %654
  %v657 = vmul.f32 %v639, %v655
  %659 = vrot.lane.b32.xlu0 %v657, 32
  %v660 = vpop.permute.xlu0 %659
  %v662 = vsel %vm25, %v660, %v651
  %s663 = scalar_lea.vmem %s2, 10
  %664 = vst.msk [vmem:[%s663] sm:$0x3] %vm133, %v662
  %s665 = scalar_lea.vmem %s0, 12
  %v666 = vld [vmem:[%s665] sm:$0x3]
  %v667 = vsel %vm25, %v660, 0
  %669 = vmatprep.subr.mxu0 0.0
  %670 = vmatpush1.msra.mxu0 %v18
  %671 = vmatprep.subr.mxu0 0.0
  %672 = vmatpush1.msra.mxu0 %v19
  %673 = vmatprep.subr.mxu0 0.0
  %674 = vmatpush1.msra.mxu0 %v20
  %675 = vmatprep.subr.mxu0 0.0
  %676 = vmatpush1.msra.mxu0 %v21
  %677 = vmatprep.subr.mxu0 0.0
  %678 = vmatpush1.msra.mxu0 0.0
  %679 = vmatprep.subr.mxu0 0.0
  %680 = vmatpush1.msra.mxu0 0.0
  %681 = vmatprep.subr.mxu0 0.0
  %682 = vmatpush1.msra.mxu0 0.0
  %683 = vmatprep.subr.mxu0 0.0
  %684 = vmatpush1.msra.mxu0 0.0
  %685 = vmatprep.subr.mxu0 0.0
  %686 = vmatpush1.msra.mxu0 0.0
  %687 = vmatprep.subr.mxu0 0.0
  %688 = vmatpush1.msra.mxu0 0.0
  %689 = vmatprep.subr.mxu0 0.0
  %690 = vmatpush1.msra.mxu0 0.0
  %691 = vmatprep.subr.mxu0 0.0
  %692 = vmatpush1.msra.mxu0 0.0
  %693 = vmatprep.subr.mxu0 0.0
  %694 = vmatpush1.msra.mxu0 0.0
  %695 = vmatprep.subr.mxu0 0.0
  %696 = vmatpush1.msra.mxu0 0.0
  %697 = vmatprep.subr.mxu0 0.0
  %698 = vmatpush1.msra.mxu0 0.0
  %699 = vmatprep.subr.mxu0 0.0
  %700 = vmatpush1.msra.mxu0 0.0
  %701 = vmatprep.subr.mxu0 0.0
  %702 = vmatpush1.msra.mxu0 0.0
  %703 = vmatprep.subr.mxu0 0.0
  %704 = vmatpush1.msra.mxu0 0.0
  %705 = vmatprep.subr.mxu0 0.0
  %706 = vmatpush1.msra.mxu0 0.0
  %707 = vmatprep.subr.mxu0 0.0
  %708 = vmatpush1.msra.mxu0 0.0
  %709 = vmatprep.subr.mxu0 0.0
  %710 = vmatpush1.msra.mxu0 0.0
  %711 = vmatprep.subr.mxu0 0.0
  %712 = vmatpush1.msra.mxu0 0.0
  %713 = vmatprep.subr.mxu0 0.0
  %714 = vmatpush1.msra.mxu0 0.0
  %715 = vmatprep.subr.mxu0 0.0
  %716 = vmatpush1.msra.mxu0 0.0
  %717 = vmatprep.subr.mxu0 0.0
  %718 = vmatpush1.msra.mxu0 0.0
  %719 = vmatprep.subr.mxu0 0.0
  %720 = vmatpush1.msra.mxu0 0.0
  %721 = vmatprep.subr.mxu0 0.0
  %722 = vmatpush1.msra.mxu0 0.0
  %723 = vmatprep.subr.mxu0 0.0
  %724 = vmatpush1.msra.mxu0 0.0
  %725 = vmatprep.subr.mxu0 0.0
  %726 = vmatpush1.msra.mxu0 0.0
  %727 = vmatprep.subr.mxu0 0.0
  %728 = vmatpush1.msra.mxu0 0.0
  %729 = vmatprep.subr.mxu0 0.0
  %730 = vmatpush1.msra.mxu0 0.0
  %731 = vmatprep.subr.mxu0 0.0
  %732 = vmatpush1.msra.mxu0 0.0
  %733 = vmatprep.mubr.f32.mxu0 0.0
  %734 = vmatmul.mubr.f32.gmra.mrb[0].mxu0 %v667
  %v735 = vpop.f32.mrb[0].mxu0
  %v736 = vadd.f32 0.0, %v735
  %v737 = vpop.f32.mrb[0].mxu0
  %738 = vdwg.mxu0
  %v739 = vadd.f32 %v666, %v736
  %v740 = vxor.u32 %v739, 2147483648
  %v741 = vmul.f32 %v740, 1.442695
  %v742 = vpow.pop %v741
  %v743 = vadd.f32 %v742, 1.0
  %v744 = vrcp.pop %v743
  %v745 = vmul.f32 1.0, %v744
  %v746 = vmul.f32 %v745, %v651
  %v747 = vtanh.pop %v739
  %749 = vrot.lane.b32.xlu0 %v747, 64
  %v750 = vpop.permute.xlu0 %749
  %v752 = vmul.f32 %v745, %v750
  %754 = vrot.lane.b32.xlu0 %v752, 32
  %v755 = vpop.permute.xlu0 %754
  %v757 = vadd.f32 %v746, %v755
  %v758 = vtanh.pop %v757
  %760 = vrot.lane.b32.xlu0 %v758, 64
  %v761 = vpop.permute.xlu0 %760
  %v763 = vmul.f32 %v745, %v761
  %765 = vrot.lane.b32.xlu0 %v763, 32
  %v766 = vpop.permute.xlu0 %765
  %v768 = vsel %vm25, %v766, %v757
  %s769 = scalar_lea.vmem %s2, 12
  %770 = vst.msk [vmem:[%s769] sm:$0x3] %vm133, %v768
  %s771 = scalar_lea.vmem %s0, 14
  %v772 = vld [vmem:[%s771] sm:$0x3]
  %v773 = vsel %vm25, %v766, 0
  %775 = vmatprep.subr.mxu0 0.0
  %776 = vmatpush1.msra.mxu0 %v18
  %777 = vmatprep.subr.mxu0 0.0
  %778 = vmatpush1.msra.mxu0 %v19
  %779 = vmatprep.subr.mxu0 0.0
  %780 = vmatpush1.msra.mxu0 %v20
  %781 = vmatprep.subr.mxu0 0.0
  %782 = vmatpush1.msra.mxu0 %v21
  %783 = vmatprep.subr.mxu0 0.0
  %784 = vmatpush1.msra.mxu0 0.0
  %785 = vmatprep.subr.mxu0 0.0
  %786 = vmatpush1.msra.mxu0 0.0
  %787 = vmatprep.subr.mxu0 0.0
  %788 = vmatpush1.msra.mxu0 0.0
  %789 = vmatprep.subr.mxu0 0.0
  %790 = vmatpush1.msra.mxu0 0.0
  %791 = vmatprep.subr.mxu0 0.0
  %792 = vmatpush1.msra.mxu0 0.0
  %793 = vmatprep.subr.mxu0 0.0
  %794 = vmatpush1.msra.mxu0 0.0
  %795 = vmatprep.subr.mxu0 0.0
  %796 = vmatpush1.msra.mxu0 0.0
  %797 = vmatprep.subr.mxu0 0.0
  %798 = vmatpush1.msra.mxu0 0.0
  %799 = vmatprep.subr.mxu0 0.0
  %800 = vmatpush1.msra.mxu0 0.0
  %801 = vmatprep.subr.mxu0 0.0
  %802 = vmatpush1.msra.mxu0 0.0
  %803 = vmatprep.subr.mxu0 0.0
  %804 = vmatpush1.msra.mxu0 0.0
  %805 = vmatprep.subr.mxu0 0.0
  %806 = vmatpush1.msra.mxu0 0.0
  %807 = vmatprep.subr.mxu0 0.0
  %808 = vmatpush1.msra.mxu0 0.0
  %809 = vmatprep.subr.mxu0 0.0
  %810 = vmatpush1.msra.mxu0 0.0
  %811 = vmatprep.subr.mxu0 0.0
  %812 = vmatpush1.msra.mxu0 0.0
  %813 = vmatprep.subr.mxu0 0.0
  %814 = vmatpush1.msra.mxu0 0.0
  %815 = vmatprep.subr.mxu0 0.0
  %816 = vmatpush1.msra.mxu0 0.0
  %817 = vmatprep.subr.mxu0 0.0
  %818 = vmatpush1.msra.mxu0 0.0
  %819 = vmatprep.subr.mxu0 0.0
  %820 = vmatpush1.msra.mxu0 0.0
  %821 = vmatprep.subr.mxu0 0.0
  %822 = vmatpush1.msra.mxu0 0.0
  %823 = vmatprep.subr.mxu0 0.0
  %824 = vmatpush1.msra.mxu0 0.0
  %825 = vmatprep.subr.mxu0 0.0
  %826 = vmatpush1.msra.mxu0 0.0
  %827 = vmatprep.subr.mxu0 0.0
  %828 = vmatpush1.msra.mxu0 0.0
  %829 = vmatprep.subr.mxu0 0.0
  %830 = vmatpush1.msra.mxu0 0.0
  %831 = vmatprep.subr.mxu0 0.0
  %832 = vmatpush1.msra.mxu0 0.0
  %833 = vmatprep.subr.mxu0 0.0
  %834 = vmatpush1.msra.mxu0 0.0
  %835 = vmatprep.subr.mxu0 0.0
  %836 = vmatpush1.msra.mxu0 0.0
  %837 = vmatprep.subr.mxu0 0.0
  %838 = vmatpush1.msra.mxu0 0.0
  %839 = vmatprep.mubr.f32.mxu0 0.0
  %840 = vmatmul.mubr.f32.gmra.mrb[0].mxu0 %v773
  %v841 = vpop.f32.mrb[0].mxu0
  %v842 = vadd.f32 0.0, %v841
  %v843 = vpop.f32.mrb[0].mxu0
  %844 = vdwg.mxu0
  %v845 = vadd.f32 %v772, %v842
  %v846 = vxor.u32 %v845, 2147483648
  %v847 = vmul.f32 %v846, 1.442695
  %v848 = vpow.pop %v847
  %v849 = vadd.f32 %v848, 1.0
  %v850 = vrcp.pop %v849
  %v851 = vmul.f32 1.0, %v850
  %v852 = vmul.f32 %v851, %v757
  %v853 = vtanh.pop %v845
  %855 = vrot.lane.b32.xlu0 %v853, 64
  %v856 = vpop.permute.xlu0 %855
  %v858 = vmul.f32 %v851, %v856
  %860 = vrot.lane.b32.xlu0 %v858, 32
  %v861 = vpop.permute.xlu0 %860
  %v863 = vadd.f32 %v852, %v861
  %v864 = vtanh.pop %v863
  %866 = vrot.lane.b32.xlu0 %v864, 64
  %v867 = vpop.permute.xlu0 %866
  %v869 = vmul.f32 %v851, %v867
  %871 = vrot.lane.b32.xlu0 %v869, 32
  %v872 = vpop.permute.xlu0 %871
  %v874 = vsel %vm25, %v872, %v863
  %s875 = scalar_lea.vmem %s2, 14
  %876 = vst.msk [vmem:[%s875] sm:$0x3] %vm133, %v874
  %vm877 = vcmask 254976
  %878 = vst.msk [vmem:[#allocation2] sm:$0x3] %vm877, %v872
  %880 = vrot.lane.b32.xlu0 %v863, 96
  %v881 = vpop.permute.xlu0 %880
  %883 = vst.msk [vmem:[#allocation3] sm:$0x3] %vm877, %v881
  // Predicated region
  $region14: #{bilstm_forward.1} parent=0 // pred_check
    _
  $region15: #{bilstm_forward.1} parent=0 // pred_check_branch
    %885 = sbr.rel (0) target = $region17
  $region16: #{bilstm_forward.1} parent=0 // pred_region
    _
  $region17: #{bilstm_forward.1} parent=0 // pred_fallthru
    _
  // Predicated region
  $region18: #{bilstm_forward.1} parent=0 // pred_check
    _
  $region19: #{bilstm_forward.1} parent=0 // pred_check_branch
    %887 = sbr.rel (0) target = $region21
  $region20: #{bilstm_forward.1} parent=0 // pred_region
    _
  $region21: #{bilstm_forward.1} parent=0 // pred_fallthru
    _

</llo_original>
